<compile_context>
chip_gen: v5e
topology: v5e:2x2
jax: 0.10.0
libtpu: 0.0.40
codegen_flags: <defaults>
</compile_context>

<pallas_src>
import functools

import jax
import jax.numpy as jnp
from jax.experimental import pallas as pl
from jax.experimental.pallas import tpu as pltpu

EPS = 1e-5  # BatchNorm2d default eps


def _gcn_kernel(x_ref, adj_ref, scale_ref, shift_ref, o_ref, *, mxu_dtype):
    """One row-tile per grid step.

    x_ref:     (tile_r, G*V)  f32   lane-packed input rows
    adj_ref:   (G*V,  G*W)    bf16  block-diagonal adjacency kron(I_G, adj)
    scale_ref: (tile_r, 1)    f32   folded BN scale per row
    shift_ref: (tile_r, 1)    f32   folded BN shift per row
    o_ref:     (tile_r, G*W)  f32
    """
    x = x_ref[...].astype(mxu_dtype)                       # VPU cast, free (mem-bound)
    y = jnp.dot(x, adj_ref[...], preferred_element_type=jnp.float32)
    y = y * scale_ref[...] + shift_ref[...]                # fused eval-mode BN (f32)
    o_ref[...] = jnp.maximum(y, 0.0).astype(o_ref.dtype)   # ReLU


def _gcn_kernel_bias(x_ref, adj_ref, bias_ref, scale_ref, shift_ref, o_ref, *, mxu_dtype):
    """Same as above but with the module's bias (broadcast along the last / W dim)."""
    x = x_ref[...].astype(mxu_dtype)
    y = jnp.dot(x, adj_ref[...], preferred_element_type=jnp.float32)
    y = (y + bias_ref[...]) * scale_ref[...] + shift_ref[...]
    o_ref[...] = jnp.maximum(y, 0.0).astype(o_ref.dtype)


def graph_convolution_forward(x, adj, gamma, beta, run_mean, run_var,
                              bias=None, eps=EPS, mxu_dtype=jnp.bfloat16):
    """x: (N, C, T, V) f32, adj: (V, W).  Returns relu(BN(x @ adj)) of shape (N, C, T, W)."""
    n, c, t, v = x.shape
    v2, w = adj.shape
    assert v2 == v, (v2, v)

    # Lane-packing factor: fold G consecutive time steps into the lane dim so the
    # matmul K/N become G*V / G*W lanes (128 when V=16).  Pad T up to a multiple of
    # G (zero rows, sliced off at the end) instead of dropping to g=1.
    g = 1 if v >= 128 else 8
    t_pad = ((t + g - 1) // g) * g
    if t_pad != t:
        x = jnp.pad(x, ((0, 0), (0, 0), (0, t_pad - t), (0, 0)))
    tp = t_pad // g
    lv, lw = g * v, g * w

    rows = n * c * tp
    x_p = x.reshape(rows, lv)                               # free contiguous reshape

    # Block-diagonal adjacency kron(I_G, adj), cast to the MXU operand dtype (tiny).
    adj_bd = jnp.kron(jnp.eye(g, dtype=jnp.float32),
                      adj.astype(jnp.float32)).astype(mxu_dtype)

    # Folded eval-mode BatchNorm:  y = conv * scale_c + shift_c, laid out per packed row.
    scale_c = gamma.astype(jnp.float32) / jnp.sqrt(run_var.astype(jnp.float32) + eps)
    shift_c = beta.astype(jnp.float32) - run_mean.astype(jnp.float32) * scale_c
    scale_rows = jnp.broadcast_to(scale_c[None, :, None], (n, c, tp)).reshape(rows, 1)
    shift_rows = jnp.broadcast_to(shift_c[None, :, None], (n, c, tp)).reshape(rows, 1)

    # Row tile: full extent when small, otherwise 1024 rows (multiple of 8 sublanes).
    # Per block at 1024x128 f32: 0.5 MiB in + 0.5 MiB out, ~2 MiB double-buffered —
    # comfortably within v7x's 64 MiB VMEM and the 32 MiB scoped limit below.
    tile_r = rows if rows <= 1024 else 1024
    rows_p = pl.cdiv(rows, tile_r) * tile_r
    if rows_p != rows:
        # Rare ragged case: pad rows so the grid divides evenly (padding discarded below).
        x_p = jnp.pad(x_p, ((0, rows_p - rows), (0, 0)))
        scale_rows = jnp.pad(scale_rows, ((0, rows_p - rows), (0, 0)))
        shift_rows = jnp.pad(shift_rows, ((0, rows_p - rows), (0, 0)))

    grid = (rows_p // tile_r,)

    in_specs = [
        pl.BlockSpec((tile_r, lv), lambda i: (i, 0)),       # x rows
        pl.BlockSpec((lv, lw), lambda i: (0, 0)),           # adjacency (constant block)
    ]
    operands = [x_p, adj_bd]
    if bias is not None:
        # Module semantics: bias (out_features,) broadcasts along the last (W) dim.
        bias_row = jnp.tile(bias.astype(jnp.float32), (g,)).reshape(1, lw)
        in_specs.append(pl.BlockSpec((1, lw), lambda i: (0, 0)))
        operands.append(bias_row)
        kern = functools.partial(_gcn_kernel_bias, mxu_dtype=mxu_dtype)
    else:
        kern = functools.partial(_gcn_kernel, mxu_dtype=mxu_dtype)
    in_specs += [
        pl.BlockSpec((tile_r, 1), lambda i: (i, 0)),        # per-row BN scale
        pl.BlockSpec((tile_r, 1), lambda i: (i, 0)),        # per-row BN shift
    ]
    operands += [scale_rows, shift_rows]

    # MXU flops actually executed (kron(I_G, adj) zeros included) + real bytes moved.
    flops_mxu = 2 * rows_p * lv * lw
    bytes_accessed = (x_p.size * 4 + adj_bd.size * adj_bd.dtype.itemsize
                      + rows_p * lw * 4            # output write (f32)
                      + 2 * rows_p * 4             # scale/shift columns
                      + (lw * 4 if bias is not None else 0))

    out_p = pl.pallas_call(
        kern,
        out_shape=jax.ShapeDtypeStruct((rows_p, lw), x.dtype),
        grid=grid,
        in_specs=in_specs,
        out_specs=pl.BlockSpec((tile_r, lw), lambda i: (i, 0)),
        compiler_params=pltpu.CompilerParams(
            dimension_semantics=("parallel",),
            vmem_limit_bytes=32 * 1024 * 1024),
        cost_estimate=pl.CostEstimate(
            flops=int(flops_mxu), transcendentals=0,
            bytes_accessed=int(bytes_accessed)),
    )(*operands)

    # Undo row padding, unpack lanes back to time (free reshape), drop T padding.
    out = out_p[:rows].reshape(n, c, t_pad, w)[:, :, :t, :]
    return out


def _reference(x, adj, gamma, beta, run_mean, run_var, bias=None, eps=EPS):
    """Pure-JAX reference of the module's forward (eval-mode BN, ReLU)."""
    y = jnp.einsum('nctv,vw->nctw', x, adj, precision=jax.lax.Precision.HIGHEST)
    if bias is not None:
        y = y + bias
    scale = gamma / jnp.sqrt(run_var + eps)
    shift = beta - run_mean * scale
    y = y * scale[None, :, None, None] + shift[None, :, None, None]
    return jnp.maximum(y, 0.0)


if __name__ == "__main__":
    # Small shapes: batch=2, channels (in_features=out_features)=4, frames T=16, joints V=16.
    N, C, T, V = 2, 4, 16, 16
    W = V
    key = jax.random.PRNGKey(0)
    kx, ka, kg, kb, km, kv = jax.random.split(key, 6)

    x = jax.random.normal(kx, (N, C, T, V), dtype=jnp.float32)
    adj = jax.random.normal(ka, (V, W), dtype=jnp.float32) / jnp.sqrt(V)

    # Deterministic synthetic BatchNorm2d(out_features=C) running stats / affine params.
    gamma = 1.0 + 0.1 * jax.random.normal(kg, (C,), dtype=jnp.float32)
    beta = 0.1 * jax.random.normal(kb, (C,), dtype=jnp.float32)
    run_mean = 0.1 * jax.random.normal(km, (C,), dtype=jnp.float32)
    run_var = jax.random.uniform(kv, (C,), minval=0.5, maxval=1.5, dtype=jnp.float32)

    out = graph_convolution_forward(x, adj, gamma, beta, run_mean, run_var, bias=None)
    out = jax.block_until_ready(out)

    ref = _reference(x, adj, gamma, beta, run_mean, run_var, bias=None)
    assert out.shape == (N, C, T, W), out.shape
    max_err = float(jnp.max(jnp.abs(out - ref)))
    # bf16 MXU operands with f32 accumulation over K=16: tolerance loosened per review.
    assert jnp.allclose(out, ref, rtol=3e-2, atol=3e-2), max_err

    print("KERNEL_OK")
</pallas_src>

<mosaic_0001>
module attributes {stable_mosaic.version = 11 : i64} {
  func.func @_gcn_kernel(%arg0: i32, %arg1: memref<16x128xf32, #tpu.memory_space<vmem>>, %arg2: memref<128x128xbf16, #tpu.memory_space<vmem>>, %arg3: memref<16x1xf32, #tpu.memory_space<vmem>>, %arg4: memref<16x1xf32, #tpu.memory_space<vmem>>, %arg5: memref<16x128xf32, #tpu.memory_space<vmem>>) attributes {dimension_semantics = [#tpu.dimension_semantics<parallel>], iteration_bounds = array<i64: 1>, scalar_prefetch = 0 : i64, scratch_operands = 0 : i64, tpu.core_type = #tpu.core_type<tc>, window_params = [{transform_indices = @transform_0, window_bounds = array<i64: 16, 128>}, {pipeline_mode = #tpu.pipeline_mode<synchronous>, transform_indices = @transform_1, window_bounds = array<i64: 128, 128>}, {transform_indices = @transform_2, window_bounds = array<i64: 16, 1>}, {transform_indices = @transform_3, window_bounds = array<i64: 16, 1>}, {transform_indices = @transform_4, window_bounds = array<i64: 16, 128>}]} {
    %c0 = arith.constant 0 : index
    %c0_0 = arith.constant 0 : index
    %0 = vector.load %arg1[%c0, %c0_0] : memref<16x128xf32, #tpu.memory_space<vmem>>, vector<16x128xf32>
    %1 = arith.truncf %0 : vector<16x128xf32> to vector<16x128xbf16>
    %c0_1 = arith.constant 0 : index
    %c0_2 = arith.constant 0 : index
    %2 = vector.load %arg2[%c0_1, %c0_2] : memref<128x128xbf16, #tpu.memory_space<vmem>>, vector<128x128xbf16>
    %cst = arith.constant dense<0.000000e+00> : vector<16x128xf32>
    %3 = tpu.matmul %1, %2, %cst {dimension_numbers = #tpu.dot_dimension_numbers<[1], [0], [0], [1], [0, 0, 1, 1], [], []>} : vector<16x128xbf16>, vector<128x128xbf16>, vector<16x128xf32> -> vector<16x128xf32>
    %c0_3 = arith.constant 0 : index
    %c0_4 = arith.constant 0 : index
    %4 = vector.load %arg3[%c0_3, %c0_4] : memref<16x1xf32, #tpu.memory_space<vmem>>, vector<16x1xf32>
    %5 = vector.broadcast %4 : vector<16x1xf32> to vector<16x128xf32>
    %6 = arith.mulf %3, %5 : vector<16x128xf32>
    %c0_5 = arith.constant 0 : index
    %c0_6 = arith.constant 0 : index
    %7 = vector.load %arg4[%c0_5, %c0_6] : memref<16x1xf32, #tpu.memory_space<vmem>>, vector<16x1xf32>
    %8 = vector.broadcast %7 : vector<16x1xf32> to vector<16x128xf32>
    %9 = arith.addf %6, %8 : vector<16x128xf32>
    %cst_7 = arith.constant 0.000000e+00 : f32
    %10 = vector.broadcast %cst_7 : f32 to vector<16x128xf32>
    %11 = arith.maximumf %9, %10 : vector<16x128xf32>
    %c0_8 = arith.constant 0 : index
    %c0_9 = arith.constant 0 : index
    %12 = vector.load %arg5[%c0_8, %c0_9] : memref<16x128xf32, #tpu.memory_space<vmem>>, vector<16x128xf32>
    tpu.vector_store %arg5[%c0_8, %c0_9], %11 {strides = array<i32>} : memref<16x128xf32, #tpu.memory_space<vmem>>, vector<16x128xf32>,
    return
  }
  func.func @transform_0(%arg0: i32) -> (i32, i32) {
    %c0_i32 = arith.constant 0 : i32
    %c0_i32_0 = arith.constant 0 : i32
    return %arg0, %c0_i32 : i32, i32
  }
  func.func @transform_1(%arg0: i32) -> (i32, i32) {
    %c0_i32 = arith.constant 0 : i32
    %c0_i32_0 = arith.constant 0 : i32
    %c0_i32_1 = arith.constant 0 : i32
    return %c0_i32, %c0_i32_0 : i32, i32
  }
  func.func @transform_2(%arg0: i32) -> (i32, i32) {
    %c0_i32 = arith.constant 0 : i32
    %c0_i32_0 = arith.constant 0 : i32
    return %arg0, %c0_i32 : i32, i32
  }
  func.func @transform_3(%arg0: i32) -> (i32, i32) {
    %c0_i32 = arith.constant 0 : i32
    %c0_i32_0 = arith.constant 0 : i32
    return %arg0, %c0_i32 : i32, i32
  }
  func.func @transform_4(%arg0: i32) -> (i32, i32) {
    %c0_i32 = arith.constant 0 : i32
    %c0_i32_0 = arith.constant 0 : i32
    return %arg0, %c0_i32 : i32, i32
  }
}

</mosaic_0001>

<llo_original>
// kernel: tpu_custom_call.1
$region0: #{tpu_custom_call.1}
  #allocation0 [shape = 'u32[]', space=smem, size = 0x4, offset = 0x4, fixed_abs, tag = 'smem constant byte address 0x4 - core index']
  #allocation1 [shape = 'u32[72,128]{1,0:T(1,128)}', space=vmem, size = 0x9000, scoped, tag = 'internal scratch']
  %s0 = inlined_call_operand.vmem [shape: f32[16,128], index: 0, kind: input, shape index: {}]
  %s1 = inlined_call_operand.hbm [shape: bf16[128,128], index: 1, kind: input, shape index: {}]
  %s2 = inlined_call_operand.vmem [shape: f32[16,1], index: 2, kind: input, shape index: {}]
  %s3 = inlined_call_operand.vmem [shape: f32[16,1], index: 3, kind: input, shape index: {}]
  %s4 = inlined_call_operand.hbm [shape: f32[16,128], index: 4, kind: output, shape index: {}]
  %s5 = sld [smem:[#allocation0]]
  $region30: #{tpu_custom_call.1} parent=0
    _
  %s7 = ssub.s32 1, %s5
  %s8 = scalar_select 0, %s7, %s5
  $region1: #{tpu_custom_call.1} parent=0
    #allocation2 [shape = 'u8[32768]{0}', space=vmem, size = 0x8000, scoped, tag = 'input window, operand 1, single buffered']
    #allocation3 [shape = 's32[1]{0}', space=sflag, size = 0x4, scoped, tag = 'scoped memory for tpu_custom_call.1']
    #allocation4 [shape = 's32[1]{0}', space=sflag, size = 0x4, scoped, tag = 'scoped memory for tpu_custom_call.1']
    #allocation5 [shape = 'u8[8192]{0}', space=vmem, size = 0x2000, scoped, tag = 'output window, operand 0, single buffered']
    %9 = vsyncpa [#allocation3], 0
    %10 = vsyncpa [#allocation4], 0
    // Predicated region
    $region2: #{tpu_custom_call.1} parent=1 // pred_check
      _
    $region3: #{tpu_custom_call.1} parent=1 // pred_check_branch
      %12 = sbr.rel (0) target = $region5
    $region4: #{tpu_custom_call.1} parent=1 // pred_region
      _
    $region5: #{tpu_custom_call.1} parent=1 // pred_fallthru
      _
    // Predicated region
    $region6: #{tpu_custom_call.1} parent=1 // pred_check
      _
    $region7: #{tpu_custom_call.1} parent=1 // pred_check_branch
      %14 = sbr.rel (0) target = $region9
    $region8: #{tpu_custom_call.1} parent=1 // pred_region
      %16 = vsyncadd [#allocation3], 0
      %s17 = sshll.u32 %s1, 4
      %s18 = int_to_ptr.hbm [resolvable:$true] %s17
      %s19 = sshll.u32 [#allocation2], 4
      %s20 = int_to_ptr.vmem [resolvable:$true] %s19
      %25 = dma.hbm_to_vmem [thread:$0]  %s18, 1024, %s20, [#allocation3], 64, 64, 4
    $region9: #{tpu_custom_call.1} parent=1 // pred_fallthru
      _
    // Predicated region
    $region10: #{tpu_custom_call.1} parent=1 // pred_check
      _
    $region11: #{tpu_custom_call.1} parent=1 // pred_check_branch
      %27 = sbr.rel (0) target = $region13
    $region12: #{tpu_custom_call.1} parent=1 // pred_region
      _
    $region13: #{tpu_custom_call.1} parent=1 // pred_fallthru
      _
    // Predicated region
    $region14: #{tpu_custom_call.1} parent=1 // pred_check
      _
    $region15: #{tpu_custom_call.1} parent=1 // pred_check_branch
      %29 = sbr.rel (0) target = $region17
    $region16: #{tpu_custom_call.1} parent=1 // pred_region
      _
    $region17: #{tpu_custom_call.1} parent=1 // pred_fallthru
      _
    // Predicated region
    $region18: #{tpu_custom_call.1} parent=1 // pred_check
      _
    $region19: #{tpu_custom_call.1} parent=1 // pred_check_branch
      %31 = sbr.rel (0) target = $region21
    $region20: #{tpu_custom_call.1} parent=1 // pred_region
      %33 = dma.done [#allocation3], 1024
    $region21: #{tpu_custom_call.1} parent=1 // pred_fallthru
      _
    %v34 = vld [vmem:[%s0] sm:$0xff]
    %v35 = vld [vmem:[%s0 + $0x8] sm:$0xff]
    %v36 = vpack.c.bf16 %v35, %v34
    %v37 = vld [vmem:[#allocation2] sm:$0xf]
    %v38 = vld [vmem:[#allocation2 + $0x4] sm:$0xf]
    %v39 = vld [vmem:[#allocation2 + $0x8] sm:$0xf]
    %v40 = vld [vmem:[#allocation2 + $0xc] sm:$0xf]
    %v41 = vld [vmem:[#allocation2 + $0x10] sm:$0xf]
    %v42 = vld [vmem:[#allocation2 + $0x14] sm:$0xf]
    %v43 = vld [vmem:[#allocation2 + $0x18] sm:$0xf]
    %v44 = vld [vmem:[#allocation2 + $0x1c] sm:$0xf]
    %v45 = vld [vmem:[#allocation2 + $0x20] sm:$0xf]
    %v46 = vld [vmem:[#allocation2 + $0x24] sm:$0xf]
    %v47 = vld [vmem:[#allocation2 + $0x28] sm:$0xf]
    %v48 = vld [vmem:[#allocation2 + $0x2c] sm:$0xf]
    %v49 = vld [vmem:[#allocation2 + $0x30] sm:$0xf]
    %v50 = vld [vmem:[#allocation2 + $0x34] sm:$0xf]
    %v51 = vld [vmem:[#allocation2 + $0x38] sm:$0xf]
    %v52 = vld [vmem:[#allocation2 + $0x3c] sm:$0xf]
    %v69 = vunpack.c.l.b16 %v37
    %v70 = vunpack.c.l.b16 %v38
    %v71 = vunpack.c.l.b16 %v39
    %v72 = vunpack.c.l.b16 %v40
    %v73 = vunpack.c.l.b16 %v41
    %v74 = vunpack.c.l.b16 %v42
    %v75 = vunpack.c.l.b16 %v43
    %v76 = vunpack.c.l.b16 %v44
    %v77 = vunpack.c.l.b16 %v45
    %v78 = vunpack.c.l.b16 %v46
    %v79 = vunpack.c.l.b16 %v47
    %v80 = vunpack.c.l.b16 %v48
    %v81 = vunpack.c.l.b16 %v49
    %v82 = vunpack.c.l.b16 %v50
    %v83 = vunpack.c.l.b16 %v51
    %v84 = vunpack.c.l.b16 %v52
    %v85 = vpack.c.b16 %v70, %v69
    %v86 = vpack.c.b16 %v72, %v71
    %v87 = vpack.c.b16 %v74, %v73
    %v88 = vpack.c.b16 %v76, %v75
    %v89 = vpack.c.b16 %v78, %v77
    %v90 = vpack.c.b16 %v80, %v79
    %v91 = vpack.c.b16 %v82, %v81
    %v92 = vpack.c.b16 %v84, %v83
    %101 = vmatpush.bf16.msra.mxu0 %v92
    %102 = vmatpush.bf16.msra.mxu0 %v91
    %103 = vmatpush.bf16.msra.mxu0 %v90
    %104 = vmatpush.bf16.msra.mxu0 %v89
    %105 = vmatpush.bf16.msra.mxu0 %v88
    %106 = vmatpush.bf16.msra.mxu0 %v87
    %107 = vmatpush.bf16.msra.mxu0 %v86
    %108 = vmatpush.bf16.msra.mxu0 %v85
    %109 = vmatmul.bf16.gmra.mxu0 %v36
    %v110 = vpop.f32.mrf.mxu0
    %v111 = vadd.f32 0.0, %v110
    %v112 = vpop.f32.mrf.mxu0
    %v113 = vadd.f32 0.0, %v112
    %114 = vdwg.mxu0
    %v115 = vld [vmem:[%s2] sm:$0xff]
    %v116 = vld [vmem:[%s2 + $0x8] sm:$0xff]
    %118 = vset.pattern.permute.xlu0 0
    %119 = vperm.xlu0 %118, %v115
    %v120 = vpop.permute.xlu0 %119
    %123 = vset.pattern.permute.xlu0 0
    %124 = vperm.xlu0 %123, %v116
    %v125 = vpop.permute.xlu0 %124
    %v127 = vmul.f32 %v111, %v120
    %v128 = vmul.f32 %v113, %v125
    %v129 = vld [vmem:[%s3] sm:$0xff]
    %v130 = vld [vmem:[%s3 + $0x8] sm:$0xff]
    %132 = vset.pattern.permute.xlu0 0
    %133 = vperm.xlu0 %132, %v129
    %v134 = vpop.permute.xlu0 %133
    %137 = vset.pattern.permute.xlu0 0
    %138 = vperm.xlu0 %137, %v130
    %v139 = vpop.permute.xlu0 %138
    %v141 = vadd.f32 %v127, %v134
    %v142 = vadd.f32 %v128, %v139
    %v143 = vmax.f32 %v141, 0.0
    %v144 = vmax.f32 %v142, 0.0
    %145 = vst [vmem:[#allocation5] sm:$0xff] %v143
    %146 = vst [vmem:[#allocation5 + $0x8] sm:$0xff] %v144
    // Predicated region
    $region22: #{tpu_custom_call.1} parent=1 // pred_check
      _
    $region23: #{tpu_custom_call.1} parent=1 // pred_check_branch
      %148 = sbr.rel (0) target = $region25
    $region24: #{tpu_custom_call.1} parent=1 // pred_region
      %150 = vsyncadd [#allocation4], 0
      %s151 = sshll.u32 [#allocation5], 4
      %s152 = int_to_ptr.vmem [resolvable:$true] %s151
      %s153 = sshll.u32 %s4, 4
      %s154 = int_to_ptr.hbm [resolvable:$true] %s153
      %159 = dma.vmem_to_hbm [thread:$0]  %s152, 256, %s154, [#allocation4], 128, 128, 8
    $region25: #{tpu_custom_call.1} parent=1 // pred_fallthru
      _
    // Predicated region
    $region26: #{tpu_custom_call.1} parent=1 // pred_check
      _
    $region27: #{tpu_custom_call.1} parent=1 // pred_check_branch
      %161 = sbr.rel (0) target = $region29
    $region28: #{tpu_custom_call.1} parent=1 // pred_region
      %163 = dma.done [#allocation4], 256
    $region29: #{tpu_custom_call.1} parent=1 // pred_fallthru
      _
    %164 = vsyncpa [#allocation3], 1
    %165 = vsyncpa [#allocation4], 1

</llo_original>
